<compile_context>
chip_gen: v7x
topology: tpu7x:2x2x1
jax: 0.10.0
libtpu: 0.0.40
codegen_flags: <defaults>
</compile_context>

<pallas_src>
import functools

import jax
import jax.numpy as jnp
from jax.experimental import pallas as pl
from jax.experimental.pallas import tpu as pltpu


def _round_up(x, m):
    return ((x + m - 1) // m) * m


def _layer_kernel(xx_ref, hx_ref,
                  norm_g_ref, norm_b_ref,
                  aff_g_ref, aff_b_ref,
                  w_h2h_ref, w_x2h_ref,
                  lnhi_w_ref, lnhi_b_ref,
                  lnhg_w_ref, lnhg_b_ref,
                  lnx_w_ref, lnx_b_ref,
                  out_ref, *, n_true):
    eps = 1e-5
    np_pad = out_ref.shape[-1]                  # lane-padded neuron dim (multiple of 128)
    pad_n = np_pad - n_true                     # number of zero lanes per N-wide row
    inv_n = 1.0 / float(n_true)
    inv_2n = 1.0 / float(2 * n_true)
    num_pathways = xx_ref.shape[0]

    hx = hx_ref[...]                                            # [Tb, Np] f32

    # ---- per-pathway LayerNorm(neurons) + sigmoid(affine(hx)) gate + gated sum ----
    # Centered variance with an exact padded-lane correction: padded lanes of x are zero,
    # so after centering they contribute (-mu)^2 each, which we subtract back out.
    in_sum = None
    for p in range(num_pathways):
        x_p = xx_ref[p]                                         # [Tb, Np]
        mu = jnp.sum(x_p, axis=-1, keepdims=True) * inv_n
        xc = x_p - mu
        ssq = jnp.sum(xc * xc, axis=-1, keepdims=True)
        if pad_n:
            ssq = ssq - float(pad_n) * (mu * mu)
        r = jax.lax.rsqrt(ssq * inv_n + eps)
        xn = xc * r * norm_g_ref[p:p + 1, :] + norm_b_ref[p:p + 1, :]
        gate = jax.nn.sigmoid(hx * aff_g_ref[p:p + 1, :] + aff_b_ref[p:p + 1, :])
        term = gate * xn
        in_sum = term if in_sum is None else in_sum + term
    in_layer = jnp.maximum(in_sum, 0.0)                         # relu, [Tb, Np]

    # ---- Integrator h2h: single fused bf16 matmul (f32 accumulate), joint LN over 2N ----
    hh = jnp.dot(hx.astype(w_h2h_ref.dtype), w_h2h_ref[...],
                 preferred_element_type=jnp.float32)            # [Tb, 2*Np]
    mu_h = jnp.sum(hh, axis=-1, keepdims=True) * inv_2n
    hhc = hh - mu_h
    ssq_h = jnp.sum(hhc * hhc, axis=-1, keepdims=True)
    if pad_n:
        ssq_h = ssq_h - float(2 * pad_n) * (mu_h * mu_h)
    rh = jax.lax.rsqrt(ssq_h * inv_2n + eps)
    # static, 128-aligned lane slices (Np is a multiple of 128) -> free
    h_i = hhc[:, :np_pad] * rh * lnhi_w_ref[...] + lnhi_b_ref[...]
    h_g = hhc[:, np_pad:] * rh * lnhg_w_ref[...] + lnhg_b_ref[...]

    # x = activation(x + h_i)
    x2 = jnp.maximum(in_layer + h_i, 0.0)                       # [Tb, Np]

    # _g = LayerNorm(Linear(x)) + h_g ;  g = sigmoid(_g)
    xg = jnp.dot(x2.astype(w_x2h_ref.dtype), w_x2h_ref[...],
                 preferred_element_type=jnp.float32)            # [Tb, Np]
    mu_x = jnp.sum(xg, axis=-1, keepdims=True) * inv_n
    xgc = xg - mu_x
    ssq_x = jnp.sum(xgc * xgc, axis=-1, keepdims=True)
    if pad_n:
        ssq_x = ssq_x - float(pad_n) * (mu_x * mu_x)
    rx = jax.lax.rsqrt(ssq_x * inv_n + eps)
    xg_n = xgc * rx * lnx_w_ref[...] + lnx_b_ref[...]
    g = jax.nn.sigmoid(xg_n + h_g)

    # h = (1 - g) * hx + g * x
    out_ref[...] = (1.0 - g) * hx + g * x2


def make_layer_params(key, in_pathways, out_neurons, tmax):
    """Deterministic parameter init mirroring the PyTorch module's __init__/_reset_parameters."""
    p, n = in_pathways, out_neurons
    k1, k2, k3 = jax.random.split(key, 3)

    # custom LayerNorm affine (ones / zeros init), shape [P, N, 1] -> squeeze to [P, N]
    norm_gamma = jnp.ones((p, n), jnp.float32)
    norm_beta = jnp.zeros((p, n), jnp.float32)

    # Affine([P, N], init_gamma=0.1, init_beta=1)
    aff_gamma = jnp.full((p, n), 0.1, jnp.float32)
    aff_beta = jnp.full((p, n), 1.0, jnp.float32)

    # Integrator linears (torch Linear default ~ U(-1/sqrt(fan_in), 1/sqrt(fan_in))),
    # stored pre-transposed so kernels compute x @ W.
    bound = 1.0 / jnp.sqrt(jnp.float32(n))
    w_x2h = jax.random.uniform(k1, (n, n), jnp.float32, -bound, bound)
    w_h2h = jax.random.uniform(k2, (n, 2 * n), jnp.float32, -bound, bound)

    # x2h LayerNorm: weight = 0.1, bias = -log(U(1, Tmax-1));  h2h LayerNorm: weight=0.1, bias=0
    lnx_w = jnp.full((1, n), 0.1, jnp.float32)
    lnx_b = -jnp.log(jax.random.uniform(k3, (1, n), jnp.float32, 1.0, float(tmax - 1)))
    lnh_w = jnp.full((1, 2 * n), 0.1, jnp.float32)
    lnh_b = jnp.zeros((1, 2 * n), jnp.float32)

    return dict(norm_gamma=norm_gamma, norm_beta=norm_beta,
                aff_gamma=aff_gamma, aff_beta=aff_beta,
                w_h2h=w_h2h, w_x2h=w_x2h,
                lnh_w=lnh_w, lnh_b=lnh_b, lnx_w=lnx_w, lnx_b=lnx_b)


def prepare_params(params, weight_dtype=jnp.bfloat16):
    """One-time (out of the hot path) padding / packing / casting of the constant params.

    All padding is zeros (jnp.pad default), which is exactly what the kernel's
    true-N-divisor LayerNorm statistics rely on.
    """
    p, n = params["norm_gamma"].shape
    np_ = _round_up(n, 128)

    def pad2(a, rows, cols):
        return jnp.pad(a, ((0, rows - a.shape[0]), (0, cols - a.shape[1])))

    w_h2h = params["w_h2h"]
    # pack the [N, 2N] h2h weight so lanes [0, Np) hold the h->i half and [Np, 2Np)
    # the h->g half (each half independently zero-padded to Np lanes).
    w_h2h_p = jnp.concatenate([pad2(w_h2h[:, :n], np_, np_),
                               pad2(w_h2h[:, n:], np_, np_)], axis=1).astype(weight_dtype)
    w_x2h_p = pad2(params["w_x2h"], np_, np_).astype(weight_dtype)

    prepared = dict(
        norm_g=pad2(params["norm_gamma"], p, np_),
        norm_b=pad2(params["norm_beta"], p, np_),
        aff_g=pad2(params["aff_gamma"], p, np_),
        aff_b=pad2(params["aff_beta"], p, np_),
        w_h2h=w_h2h_p,
        w_x2h=w_x2h_p,
        lnhi_w=pad2(params["lnh_w"][:, :n], 1, np_),
        lnhi_b=pad2(params["lnh_b"][:, :n], 1, np_),
        lnhg_w=pad2(params["lnh_w"][:, n:], 1, np_),
        lnhg_b=pad2(params["lnh_b"][:, n:], 1, np_),
        lnx_w=pad2(params["lnx_w"], 1, np_),
        lnx_b=pad2(params["lnx_b"], 1, np_),
    )
    return prepared


@jax.jit
def layer_forward(xs_list, init_h, prepared):
    """xs_list: list of P pathway inputs, each [B, N, T].  init_h: [B, N].
    prepared: output of prepare_params.  Returns [B, N, 1] (== torch.stack(hiddens[1:], 2))."""
    b, n = init_h.shape
    p = len(xs_list)
    np_ = prepared["w_x2h"].shape[0]

    bp = _round_up(b, 8)                    # sublane-dense batch
    tile_b = bp if bp <= 128 else 128       # batch tile (grid axis); multiple of 8
    bp = _round_up(bp, tile_b)
    grid_b = bp // tile_b

    # Only the last time slice feeds the output (the norm is independent per time step),
    # so slice each pathway's last step before stacking -- no [B,P,N,T] copy, no dead compute.
    xx = jnp.stack([x[:, :, -1] for x in xs_list], axis=0)          # [P, B, N]
    xx = jnp.pad(xx, ((0, 0), (0, bp - b), (0, np_ - n)))           # [P, Bp, Np]
    hx = jnp.pad(init_h, ((0, bp - b), (0, np_ - n)))               # [Bp, Np]

    const = lambda i: (0, 0)                # weights / params stay resident across the grid
    grid_spec = pltpu.PrefetchScalarGridSpec(
        num_scalar_prefetch=0,
        grid=(grid_b,),
        in_specs=[
            pl.BlockSpec((p, tile_b, np_), lambda i: (0, i, 0)),     # xx
            pl.BlockSpec((tile_b, np_), lambda i: (i, 0)),           # hx
            pl.BlockSpec((p, np_), const),                           # norm_g
            pl.BlockSpec((p, np_), const),                           # norm_b
            pl.BlockSpec((p, np_), const),                           # aff_g
            pl.BlockSpec((p, np_), const),                           # aff_b
            pl.BlockSpec((np_, 2 * np_), const),                     # w_h2h (packed halves)
            pl.BlockSpec((np_, np_), const),                         # w_x2h
            pl.BlockSpec((1, np_), const),                           # lnhi_w
            pl.BlockSpec((1, np_), const),                           # lnhi_b
            pl.BlockSpec((1, np_), const),                           # lnhg_w
            pl.BlockSpec((1, np_), const),                           # lnhg_b
            pl.BlockSpec((1, np_), const),                           # lnx_w
            pl.BlockSpec((1, np_), const),                           # lnx_b
        ],
        out_specs=pl.BlockSpec((tile_b, np_), lambda i: (i, 0)),
    )

    h = pl.pallas_call(
        functools.partial(_layer_kernel, n_true=n),
        out_shape=jax.ShapeDtypeStruct((bp, np_), jnp.float32),
        grid_spec=grid_spec,
        compiler_params=pltpu.CompilerParams(
            dimension_semantics=("parallel",)),
    )(xx, hx,
      prepared["norm_g"], prepared["norm_b"], prepared["aff_g"], prepared["aff_b"],
      prepared["w_h2h"], prepared["w_x2h"],
      prepared["lnhi_w"], prepared["lnhi_b"], prepared["lnhg_w"], prepared["lnhg_b"],
      prepared["lnx_w"], prepared["lnx_b"])

    return h[:b, :n, None]                                           # [B, N, 1]


def layer_forward_ref(xs_list, init_h, params, eps=1e-5):
    """Pure-JAX (f32) reference mirroring the PyTorch Layer.forward (EI=None)."""
    xs = jnp.stack(xs_list, axis=1)                                  # [B, P, N, T]
    mean = xs.mean(axis=2, keepdims=True)
    var = ((xs - mean) ** 2).mean(axis=2, keepdims=True)
    xs = (xs - mean) / jnp.sqrt(var + eps)
    xs = xs * params["norm_gamma"][None, :, :, None] + params["norm_beta"][None, :, :, None]

    hx = init_h
    xx = xs[..., -1]                                                 # [B, P, N]
    g = jax.nn.sigmoid(hx[:, None, :] * params["aff_gamma"][None] + params["aff_beta"][None])
    in_layer = jax.nn.relu((g * xx).sum(axis=1))                     # [B, N]

    n = hx.shape[-1]
    hh = hx @ params["w_h2h"]                                        # [B, 2N]
    mu = hh.mean(-1, keepdims=True)
    v = ((hh - mu) ** 2).mean(-1, keepdims=True)
    hh = (hh - mu) / jnp.sqrt(v + eps) * params["lnh_w"] + params["lnh_b"]
    h_i, h_g = hh[:, :n], hh[:, n:]

    x2 = jax.nn.relu(in_layer + h_i)
    xg = x2 @ params["w_x2h"]
    mu2 = xg.mean(-1, keepdims=True)
    v2 = ((xg - mu2) ** 2).mean(-1, keepdims=True)
    xg = (xg - mu2) / jnp.sqrt(v2 + eps) * params["lnx_w"] + params["lnx_b"]
    gg = jax.nn.sigmoid(xg + h_g)
    h = (1.0 - gg) * hx + gg * x2
    return h[:, :, None]                                             # [B, N, 1]


if __name__ == "__main__":
    B, P, N, T = 2, 4, 32, 8       # batch, in_pathways, out_neurons, time steps
    TMAX = 10

    key = jax.random.PRNGKey(0)
    k_params, k_xs, k_h = jax.random.split(key, 3)

    params = make_layer_params(k_params, P, N, TMAX)
    # one-time parameter padding / packing / bf16 cast (out of the jitted hot path)
    prepared = jax.tree_util.tree_map(jax.device_put, prepare_params(params))

    # xs is a list of P pathway inputs, each [B, N, T] (as in the PyTorch forward).
    xs_list = [jax.random.normal(jax.random.fold_in(k_xs, i), (B, N, T), jnp.float32)
               for i in range(P)]
    init_h = jax.random.normal(k_h, (B, N), jnp.float32)

    out = layer_forward(xs_list, init_h, prepared)
    jax.block_until_ready(out)
    assert out.shape == (B, N, 1), out.shape

    ref = layer_forward_ref(xs_list, init_h, params)
    max_err = float(jnp.max(jnp.abs(out - ref)))
    # bf16 weights / MXU inputs vs. the f32 reference -> widened tolerance.
    assert max_err < 2e-2, f"max abs err vs reference: {max_err}"

    print("KERNEL_OK")
</pallas_src>

<mosaic_0001>
module attributes {stable_mosaic.version = 11 : i64} {
  func.func @_layer_kernel(%arg0: i32, %arg1: memref<4x8x128xf32, #tpu.memory_space<vmem>>, %arg2: memref<8x128xf32, #tpu.memory_space<vmem>>, %arg3: memref<4x128xf32, #tpu.memory_space<vmem>>, %arg4: memref<4x128xf32, #tpu.memory_space<vmem>>, %arg5: memref<4x128xf32, #tpu.memory_space<vmem>>, %arg6: memref<4x128xf32, #tpu.memory_space<vmem>>, %arg7: memref<128x256xbf16, #tpu.memory_space<vmem>>, %arg8: memref<128x128xbf16, #tpu.memory_space<vmem>>, %arg9: memref<1x128xf32, #tpu.memory_space<vmem>>, %arg10: memref<1x128xf32, #tpu.memory_space<vmem>>, %arg11: memref<1x128xf32, #tpu.memory_space<vmem>>, %arg12: memref<1x128xf32, #tpu.memory_space<vmem>>, %arg13: memref<1x128xf32, #tpu.memory_space<vmem>>, %arg14: memref<1x128xf32, #tpu.memory_space<vmem>>, %arg15: memref<8x128xf32, #tpu.memory_space<vmem>>) attributes {dimension_semantics = [#tpu.dimension_semantics<parallel>], iteration_bounds = array<i64: 1>, scalar_prefetch = 0 : i64, scratch_operands = 0 : i64, tpu.core_type = #tpu.core_type<tc>, window_params = [{transform_indices = @transform_0, window_bounds = array<i64: 4, 8, 128>}, {transform_indices = @transform_1, window_bounds = array<i64: 8, 128>}, {pipeline_mode = #tpu.pipeline_mode<synchronous>, transform_indices = @transform_2, window_bounds = array<i64: 4, 128>}, {pipeline_mode = #tpu.pipeline_mode<synchronous>, transform_indices = @transform_3, window_bounds = array<i64: 4, 128>}, {pipeline_mode = #tpu.pipeline_mode<synchronous>, transform_indices = @transform_4, window_bounds = array<i64: 4, 128>}, {pipeline_mode = #tpu.pipeline_mode<synchronous>, transform_indices = @transform_5, window_bounds = array<i64: 4, 128>}, {pipeline_mode = #tpu.pipeline_mode<synchronous>, transform_indices = @transform_6, window_bounds = array<i64: 128, 256>}, {pipeline_mode = #tpu.pipeline_mode<synchronous>, transform_indices = @transform_7, window_bounds = array<i64: 128, 128>}, {pipeline_mode = #tpu.pipeline_mode<synchronous>, transform_indices = @transform_8, window_bounds = array<i64: 1, 128>}, {pipeline_mode = #tpu.pipeline_mode<synchronous>, transform_indices = @transform_9, window_bounds = array<i64: 1, 128>}, {pipeline_mode = #tpu.pipeline_mode<synchronous>, transform_indices = @transform_10, window_bounds = array<i64: 1, 128>}, {pipeline_mode = #tpu.pipeline_mode<synchronous>, transform_indices = @transform_11, window_bounds = array<i64: 1, 128>}, {pipeline_mode = #tpu.pipeline_mode<synchronous>, transform_indices = @transform_12, window_bounds = array<i64: 1, 128>}, {pipeline_mode = #tpu.pipeline_mode<synchronous>, transform_indices = @transform_13, window_bounds = array<i64: 1, 128>}, {transform_indices = @transform_14, window_bounds = array<i64: 8, 128>}]} {
    %c0 = arith.constant 0 : index
    %c0_0 = arith.constant 0 : index
    %0 = vector.load %arg2[%c0, %c0_0] : memref<8x128xf32, #tpu.memory_space<vmem>>, vector<8x128xf32>
    %c0_1 = arith.constant 0 : index
    %c0_2 = arith.constant 0 : index
    %c0_3 = arith.constant 0 : index
    %1 = vector.load %arg1[%c0_1, %c0_2, %c0_3] : memref<4x8x128xf32, #tpu.memory_space<vmem>>, vector<1x8x128xf32>
    %2 = vector.shape_cast %1 : vector<1x8x128xf32> to vector<8x128xf32>
    %cst = arith.constant dense<0.000000e+00> : vector<8xf32>
    %3 = vector.multi_reduction <add>, %2, %cst [1] : vector<8x128xf32> to vector<8xf32>
    %4 = vector.shape_cast %3 : vector<8xf32> to vector<8x1xf32>
    %cst_4 = arith.constant 3.125000e-02 : f32
    %5 = vector.broadcast %cst_4 : f32 to vector<8x1xf32>
    %6 = arith.mulf %4, %5 : vector<8x1xf32>
    %7 = vector.broadcast %6 : vector<8x1xf32> to vector<8x128xf32>
    %8 = arith.subf %2, %7 : vector<8x128xf32>
    %9 = arith.mulf %8, %8 : vector<8x128xf32>
    %cst_5 = arith.constant dense<0.000000e+00> : vector<8xf32>
    %10 = vector.multi_reduction <add>, %9, %cst_5 [1] : vector<8x128xf32> to vector<8xf32>
    %11 = vector.shape_cast %10 : vector<8xf32> to vector<8x1xf32>
    %12 = arith.mulf %6, %6 : vector<8x1xf32>
    %cst_6 = arith.constant 9.600000e+01 : f32
    %13 = vector.broadcast %cst_6 : f32 to vector<8x1xf32>
    %14 = arith.mulf %13, %12 : vector<8x1xf32>
    %15 = arith.subf %11, %14 : vector<8x1xf32>
    %cst_7 = arith.constant 3.125000e-02 : f32
    %16 = vector.broadcast %cst_7 : f32 to vector<8x1xf32>
    %17 = arith.mulf %15, %16 : vector<8x1xf32>
    %cst_8 = arith.constant 9.99999974E-6 : f32
    %18 = vector.broadcast %cst_8 : f32 to vector<8x1xf32>
    %19 = arith.addf %17, %18 : vector<8x1xf32>
    %20 = math.rsqrt %19 : vector<8x1xf32>
    %21 = vector.broadcast %20 : vector<8x1xf32> to vector<8x128xf32>
    %22 = arith.mulf %8, %21 : vector<8x128xf32>
    %c0_9 = arith.constant 0 : index
    %c0_10 = arith.constant 0 : index
    %23 = vector.load %arg3[%c0_9, %c0_10] : memref<4x128xf32, #tpu.memory_space<vmem>>, vector<1x128xf32>
    %24 = vector.broadcast %23 : vector<1x128xf32> to vector<8x128xf32>
    %25 = arith.mulf %22, %24 : vector<8x128xf32>
    %c0_11 = arith.constant 0 : index
    %c0_12 = arith.constant 0 : index
    %26 = vector.load %arg4[%c0_11, %c0_12] : memref<4x128xf32, #tpu.memory_space<vmem>>, vector<1x128xf32>
    %27 = vector.broadcast %26 : vector<1x128xf32> to vector<8x128xf32>
    %28 = arith.addf %25, %27 : vector<8x128xf32>
    %c0_13 = arith.constant 0 : index
    %c0_14 = arith.constant 0 : index
    %29 = vector.load %arg5[%c0_13, %c0_14] : memref<4x128xf32, #tpu.memory_space<vmem>>, vector<1x128xf32>
    %30 = vector.broadcast %29 : vector<1x128xf32> to vector<8x128xf32>
    %31 = arith.mulf %0, %30 : vector<8x128xf32>
    %c0_15 = arith.constant 0 : index
    %c0_16 = arith.constant 0 : index
    %32 = vector.load %arg6[%c0_15, %c0_16] : memref<4x128xf32, #tpu.memory_space<vmem>>, vector<1x128xf32>
    %33 = vector.broadcast %32 : vector<1x128xf32> to vector<8x128xf32>
    %34 = arith.addf %31, %33 : vector<8x128xf32>
    %35 = arith.negf %34 : vector<8x128xf32>
    %36 = math.exp %35 : vector<8x128xf32>
    %cst_17 = arith.constant 1.000000e+00 : f32
    %37 = vector.broadcast %cst_17 : f32 to vector<8x128xf32>
    %38 = arith.addf %37, %36 : vector<8x128xf32>
    %39 = arith.divf %37, %38 : vector<8x128xf32>
    %40 = arith.mulf %39, %28 : vector<8x128xf32>
    %c1 = arith.constant 1 : index
    %c0_18 = arith.constant 0 : index
    %c0_19 = arith.constant 0 : index
    %41 = vector.load %arg1[%c1, %c0_18, %c0_19] : memref<4x8x128xf32, #tpu.memory_space<vmem>>, vector<1x8x128xf32>
    %42 = vector.shape_cast %41 : vector<1x8x128xf32> to vector<8x128xf32>
    %cst_20 = arith.constant dense<0.000000e+00> : vector<8xf32>
    %43 = vector.multi_reduction <add>, %42, %cst_20 [1] : vector<8x128xf32> to vector<8xf32>
    %44 = vector.shape_cast %43 : vector<8xf32> to vector<8x1xf32>
    %cst_21 = arith.constant 3.125000e-02 : f32
    %45 = vector.broadcast %cst_21 : f32 to vector<8x1xf32>
    %46 = arith.mulf %44, %45 : vector<8x1xf32>
    %47 = vector.broadcast %46 : vector<8x1xf32> to vector<8x128xf32>
    %48 = arith.subf %42, %47 : vector<8x128xf32>
    %49 = arith.mulf %48, %48 : vector<8x128xf32>
    %cst_22 = arith.constant dense<0.000000e+00> : vector<8xf32>
    %50 = vector.multi_reduction <add>, %49, %cst_22 [1] : vector<8x128xf32> to vector<8xf32>
    %51 = vector.shape_cast %50 : vector<8xf32> to vector<8x1xf32>
    %52 = arith.mulf %46, %46 : vector<8x1xf32>
    %cst_23 = arith.constant 9.600000e+01 : f32
    %53 = vector.broadcast %cst_23 : f32 to vector<8x1xf32>
    %54 = arith.mulf %53, %52 : vector<8x1xf32>
    %55 = arith.subf %51, %54 : vector<8x1xf32>
    %cst_24 = arith.constant 3.125000e-02 : f32
    %56 = vector.broadcast %cst_24 : f32 to vector<8x1xf32>
    %57 = arith.mulf %55, %56 : vector<8x1xf32>
    %cst_25 = arith.constant 9.99999974E-6 : f32
    %58 = vector.broadcast %cst_25 : f32 to vector<8x1xf32>
    %59 = arith.addf %57, %58 : vector<8x1xf32>
    %60 = math.rsqrt %59 : vector<8x1xf32>
    %61 = vector.broadcast %60 : vector<8x1xf32> to vector<8x128xf32>
    %62 = arith.mulf %48, %61 : vector<8x128xf32>
    %c1_26 = arith.constant 1 : index
    %c0_27 = arith.constant 0 : index
    %63 = vector.load %arg3[%c1_26, %c0_27] : memref<4x128xf32, #tpu.memory_space<vmem>>, vector<1x128xf32>
    %64 = vector.broadcast %63 : vector<1x128xf32> to vector<8x128xf32>
    %65 = arith.mulf %62, %64 : vector<8x128xf32>
    %c1_28 = arith.constant 1 : index
    %c0_29 = arith.constant 0 : index
    %66 = vector.load %arg4[%c1_28, %c0_29] : memref<4x128xf32, #tpu.memory_space<vmem>>, vector<1x128xf32>
    %67 = vector.broadcast %66 : vector<1x128xf32> to vector<8x128xf32>
    %68 = arith.addf %65, %67 : vector<8x128xf32>
    %c1_30 = arith.constant 1 : index
    %c0_31 = arith.constant 0 : index
    %69 = vector.load %arg5[%c1_30, %c0_31] : memref<4x128xf32, #tpu.memory_space<vmem>>, vector<1x128xf32>
    %70 = vector.broadcast %69 : vector<1x128xf32> to vector<8x128xf32>
    %71 = arith.mulf %0, %70 : vector<8x128xf32>
    %c1_32 = arith.constant 1 : index
    %c0_33 = arith.constant 0 : index
    %72 = vector.load %arg6[%c1_32, %c0_33] : memref<4x128xf32, #tpu.memory_space<vmem>>, vector<1x128xf32>
    %73 = vector.broadcast %72 : vector<1x128xf32> to vector<8x128xf32>
    %74 = arith.addf %71, %73 : vector<8x128xf32>
    %75 = arith.negf %74 : vector<8x128xf32>
    %76 = math.exp %75 : vector<8x128xf32>
    %cst_34 = arith.constant 1.000000e+00 : f32
    %77 = vector.broadcast %cst_34 : f32 to vector<8x128xf32>
    %78 = arith.addf %77, %76 : vector<8x128xf32>
    %79 = arith.divf %77, %78 : vector<8x128xf32>
    %80 = arith.mulf %79, %68 : vector<8x128xf32>
    %81 = arith.addf %40, %80 : vector<8x128xf32>
    %c2 = arith.constant 2 : index
    %c0_35 = arith.constant 0 : index
    %c0_36 = arith.constant 0 : index
    %82 = vector.load %arg1[%c2, %c0_35, %c0_36] : memref<4x8x128xf32, #tpu.memory_space<vmem>>, vector<1x8x128xf32>
    %83 = vector.shape_cast %82 : vector<1x8x128xf32> to vector<8x128xf32>
    %cst_37 = arith.constant dense<0.000000e+00> : vector<8xf32>
    %84 = vector.multi_reduction <add>, %83, %cst_37 [1] : vector<8x128xf32> to vector<8xf32>
    %85 = vector.shape_cast %84 : vector<8xf32> to vector<8x1xf32>
    %cst_38 = arith.constant 3.125000e-02 : f32
    %86 = vector.broadcast %cst_38 : f32 to vector<8x1xf32>
    %87 = arith.mulf %85, %86 : vector<8x1xf32>
    %88 = vector.broadcast %87 : vector<8x1xf32> to vector<8x128xf32>
    %89 = arith.subf %83, %88 : vector<8x128xf32>
    %90 = arith.mulf %89, %89 : vector<8x128xf32>
    %cst_39 = arith.constant dense<0.000000e+00> : vector<8xf32>
    %91 = vector.multi_reduction <add>, %90, %cst_39 [1] : vector<8x128xf32> to vector<8xf32>
    %92 = vector.shape_cast %91 : vector<8xf32> to vector<8x1xf32>
    %93 = arith.mulf %87, %87 : vector<8x1xf32>
    %cst_40 = arith.constant 9.600000e+01 : f32
    %94 = vector.broadcast %cst_40 : f32 to vector<8x1xf32>
    %95 = arith.mulf %94, %93 : vector<8x1xf32>
    %96 = arith.subf %92, %95 : vector<8x1xf32>
    %cst_41 = arith.constant 3.125000e-02 : f32
    %97 = vector.broadcast %cst_41 : f32 to vector<8x1xf32>
    %98 = arith.mulf %96, %97 : vector<8x1xf32>
    %cst_42 = arith.constant 9.99999974E-6 : f32
    %99 = vector.broadcast %cst_42 : f32 to vector<8x1xf32>
    %100 = arith.addf %98, %99 : vector<8x1xf32>
    %101 = math.rsqrt %100 : vector<8x1xf32>
    %102 = vector.broadcast %101 : vector<8x1xf32> to vector<8x128xf32>
    %103 = arith.mulf %89, %102 : vector<8x128xf32>
    %c2_43 = arith.constant 2 : index
    %c0_44 = arith.constant 0 : index
    %104 = vector.load %arg3[%c2_43, %c0_44] : memref<4x128xf32, #tpu.memory_space<vmem>>, vector<1x128xf32>
    %105 = vector.broadcast %104 : vector<1x128xf32> to vector<8x128xf32>
    %106 = arith.mulf %103, %105 : vector<8x128xf32>
    %c2_45 = arith.constant 2 : index
    %c0_46 = arith.constant 0 : index
    %107 = vector.load %arg4[%c2_45, %c0_46] : memref<4x128xf32, #tpu.memory_space<vmem>>, vector<1x128xf32>
    %108 = vector.broadcast %107 : vector<1x128xf32> to vector<8x128xf32>
    %109 = arith.addf %106, %108 : vector<8x128xf32>
    %c2_47 = arith.constant 2 : index
    %c0_48 = arith.constant 0 : index
    %110 = vector.load %arg5[%c2_47, %c0_48] : memref<4x128xf32, #tpu.memory_space<vmem>>, vector<1x128xf32>
    %111 = vector.broadcast %110 : vector<1x128xf32> to vector<8x128xf32>
    %112 = arith.mulf %0, %111 : vector<8x128xf32>
    %c2_49 = arith.constant 2 : index
    %c0_50 = arith.constant 0 : index
    %113 = vector.load %arg6[%c2_49, %c0_50] : memref<4x128xf32, #tpu.memory_space<vmem>>, vector<1x128xf32>
    %114 = vector.broadcast %113 : vector<1x128xf32> to vector<8x128xf32>
    %115 = arith.addf %112, %114 : vector<8x128xf32>
    %116 = arith.negf %115 : vector<8x128xf32>
    %117 = math.exp %116 : vector<8x128xf32>
    %cst_51 = arith.constant 1.000000e+00 : f32
    %118 = vector.broadcast %cst_51 : f32 to vector<8x128xf32>
    %119 = arith.addf %118, %117 : vector<8x128xf32>
    %120 = arith.divf %118, %119 : vector<8x128xf32>
    %121 = arith.mulf %120, %109 : vector<8x128xf32>
    %122 = arith.addf %81, %121 : vector<8x128xf32>
    %c3 = arith.constant 3 : index
    %c0_52 = arith.constant 0 : index
    %c0_53 = arith.constant 0 : index
    %123 = vector.load %arg1[%c3, %c0_52, %c0_53] : memref<4x8x128xf32, #tpu.memory_space<vmem>>, vector<1x8x128xf32>
    %124 = vector.shape_cast %123 : vector<1x8x128xf32> to vector<8x128xf32>
    %cst_54 = arith.constant dense<0.000000e+00> : vector<8xf32>
    %125 = vector.multi_reduction <add>, %124, %cst_54 [1] : vector<8x128xf32> to vector<8xf32>
    %126 = vector.shape_cast %125 : vector<8xf32> to vector<8x1xf32>
    %cst_55 = arith.constant 3.125000e-02 : f32
    %127 = vector.broadcast %cst_55 : f32 to vector<8x1xf32>
    %128 = arith.mulf %126, %127 : vector<8x1xf32>
    %129 = vector.broadcast %128 : vector<8x1xf32> to vector<8x128xf32>
    %130 = arith.subf %124, %129 : vector<8x128xf32>
    %131 = arith.mulf %130, %130 : vector<8x128xf32>
    %cst_56 = arith.constant dense<0.000000e+00> : vector<8xf32>
    %132 = vector.multi_reduction <add>, %131, %cst_56 [1] : vector<8x128xf32> to vector<8xf32>
    %133 = vector.shape_cast %132 : vector<8xf32> to vector<8x1xf32>
    %134 = arith.mulf %128, %128 : vector<8x1xf32>
    %cst_57 = arith.constant 9.600000e+01 : f32
    %135 = vector.broadcast %cst_57 : f32 to vector<8x1xf32>
    %136 = arith.mulf %135, %134 : vector<8x1xf32>
    %137 = arith.subf %133, %136 : vector<8x1xf32>
    %cst_58 = arith.constant 3.125000e-02 : f32
    %138 = vector.broadcast %cst_58 : f32 to vector<8x1xf32>
    %139 = arith.mulf %137, %138 : vector<8x1xf32>
    %cst_59 = arith.constant 9.99999974E-6 : f32
    %140 = vector.broadcast %cst_59 : f32 to vector<8x1xf32>
    %141 = arith.addf %139, %140 : vector<8x1xf32>
    %142 = math.rsqrt %141 : vector<8x1xf32>
    %143 = vector.broadcast %142 : vector<8x1xf32> to vector<8x128xf32>
    %144 = arith.mulf %130, %143 : vector<8x128xf32>
    %c3_60 = arith.constant 3 : index
    %c0_61 = arith.constant 0 : index
    %145 = vector.load %arg3[%c3_60, %c0_61] : memref<4x128xf32, #tpu.memory_space<vmem>>, vector<1x128xf32>
    %146 = vector.broadcast %145 : vector<1x128xf32> to vector<8x128xf32>
    %147 = arith.mulf %144, %146 : vector<8x128xf32>
    %c3_62 = arith.constant 3 : index
    %c0_63 = arith.constant 0 : index
    %148 = vector.load %arg4[%c3_62, %c0_63] : memref<4x128xf32, #tpu.memory_space<vmem>>, vector<1x128xf32>
    %149 = vector.broadcast %148 : vector<1x128xf32> to vector<8x128xf32>
    %150 = arith.addf %147, %149 : vector<8x128xf32>
    %c3_64 = arith.constant 3 : index
    %c0_65 = arith.constant 0 : index
    %151 = vector.load %arg5[%c3_64, %c0_65] : memref<4x128xf32, #tpu.memory_space<vmem>>, vector<1x128xf32>
    %152 = vector.broadcast %151 : vector<1x128xf32> to vector<8x128xf32>
    %153 = arith.mulf %0, %152 : vector<8x128xf32>
    %c3_66 = arith.constant 3 : index
    %c0_67 = arith.constant 0 : index
    %154 = vector.load %arg6[%c3_66, %c0_67] : memref<4x128xf32, #tpu.memory_space<vmem>>, vector<1x128xf32>
    %155 = vector.broadcast %154 : vector<1x128xf32> to vector<8x128xf32>
    %156 = arith.addf %153, %155 : vector<8x128xf32>
    %157 = arith.negf %156 : vector<8x128xf32>
    %158 = math.exp %157 : vector<8x128xf32>
    %cst_68 = arith.constant 1.000000e+00 : f32
    %159 = vector.broadcast %cst_68 : f32 to vector<8x128xf32>
    %160 = arith.addf %159, %158 : vector<8x128xf32>
    %161 = arith.divf %159, %160 : vector<8x128xf32>
    %162 = arith.mulf %161, %150 : vector<8x128xf32>
    %163 = arith.addf %122, %162 : vector<8x128xf32>
    %cst_69 = arith.constant 0.000000e+00 : f32
    %164 = vector.broadcast %cst_69 : f32 to vector<8x128xf32>
    %165 = arith.maximumf %163, %164 : vector<8x128xf32>
    %166 = arith.truncf %0 : vector<8x128xf32> to vector<8x128xbf16>
    %c0_70 = arith.constant 0 : index
    %c0_71 = arith.constant 0 : index
    %167 = vector.load %arg7[%c0_70, %c0_71] : memref<128x256xbf16, #tpu.memory_space<vmem>>, vector<128x256xbf16>
    %cst_72 = arith.constant dense<0.000000e+00> : vector<8x256xf32>
    %168 = tpu.matmul %166, %167, %cst_72 {dimension_numbers = #tpu.dot_dimension_numbers<[1], [0], [0], [1], [0, 0, 1, 1], [], []>} : vector<8x128xbf16>, vector<128x256xbf16>, vector<8x256xf32> -> vector<8x256xf32>
    %cst_73 = arith.constant dense<0.000000e+00> : vector<8xf32>
    %169 = vector.multi_reduction <add>, %168, %cst_73 [1] : vector<8x256xf32> to vector<8xf32>
    %170 = vector.shape_cast %169 : vector<8xf32> to vector<8x1xf32>
    %cst_74 = arith.constant 1.562500e-02 : f32
    %171 = vector.broadcast %cst_74 : f32 to vector<8x1xf32>
    %172 = arith.mulf %170, %171 : vector<8x1xf32>
    %173 = vector.broadcast %172 : vector<8x1xf32> to vector<8x256xf32>
    %174 = arith.subf %168, %173 : vector<8x256xf32>
    %175 = arith.mulf %174, %174 : vector<8x256xf32>
    %cst_75 = arith.constant dense<0.000000e+00> : vector<8xf32>
    %176 = vector.multi_reduction <add>, %175, %cst_75 [1] : vector<8x256xf32> to vector<8xf32>
    %177 = vector.shape_cast %176 : vector<8xf32> to vector<8x1xf32>
    %178 = arith.mulf %172, %172 : vector<8x1xf32>
    %cst_76 = arith.constant 1.920000e+02 : f32
    %179 = vector.broadcast %cst_76 : f32 to vector<8x1xf32>
    %180 = arith.mulf %179, %178 : vector<8x1xf32>
    %181 = arith.subf %177, %180 : vector<8x1xf32>
    %cst_77 = arith.constant 1.562500e-02 : f32
    %182 = vector.broadcast %cst_77 : f32 to vector<8x1xf32>
    %183 = arith.mulf %181, %182 : vector<8x1xf32>
    %cst_78 = arith.constant 9.99999974E-6 : f32
    %184 = vector.broadcast %cst_78 : f32 to vector<8x1xf32>
    %185 = arith.addf %183, %184 : vector<8x1xf32>
    %186 = math.rsqrt %185 : vector<8x1xf32>
    %187 = vector.extract_strided_slice %174 {offsets = [0, 0], sizes = [8, 128], strides = [1, 1]} : vector<8x256xf32> to vector<8x128xf32>
    %188 = vector.broadcast %186 : vector<8x1xf32> to vector<8x128xf32>
    %189 = arith.mulf %187, %188 : vector<8x128xf32>
    %c0_79 = arith.constant 0 : index
    %c0_80 = arith.constant 0 : index
    %190 = vector.load %arg9[%c0_79, %c0_80] : memref<1x128xf32, #tpu.memory_space<vmem>>, vector<1x128xf32>
    %191 = vector.broadcast %190 : vector<1x128xf32> to vector<8x128xf32>
    %192 = arith.mulf %189, %191 : vector<8x128xf32>
    %c0_81 = arith.constant 0 : index
    %c0_82 = arith.constant 0 : index
    %193 = vector.load %arg10[%c0_81, %c0_82] : memref<1x128xf32, #tpu.memory_space<vmem>>, vector<1x128xf32>
    %194 = vector.broadcast %193 : vector<1x128xf32> to vector<8x128xf32>
    %195 = arith.addf %192, %194 : vector<8x128xf32>
    %196 = vector.extract_strided_slice %174 {offsets = [0, 128], sizes = [8, 128], strides = [1, 1]} : vector<8x256xf32> to vector<8x128xf32>
    %197 = vector.broadcast %186 : vector<8x1xf32> to vector<8x128xf32>
    %198 = arith.mulf %196, %197 : vector<8x128xf32>
    %c0_83 = arith.constant 0 : index
    %c0_84 = arith.constant 0 : index
    %199 = vector.load %arg11[%c0_83, %c0_84] : memref<1x128xf32, #tpu.memory_space<vmem>>, vector<1x128xf32>
    %200 = vector.broadcast %199 : vector<1x128xf32> to vector<8x128xf32>
    %201 = arith.mulf %198, %200 : vector<8x128xf32>
    %c0_85 = arith.constant 0 : index
    %c0_86 = arith.constant 0 : index
    %202 = vector.load %arg12[%c0_85, %c0_86] : memref<1x128xf32, #tpu.memory_space<vmem>>, vector<1x128xf32>
    %203 = vector.broadcast %202 : vector<1x128xf32> to vector<8x128xf32>
    %204 = arith.addf %201, %203 : vector<8x128xf32>
    %205 = arith.addf %165, %195 : vector<8x128xf32>
    %cst_87 = arith.constant 0.000000e+00 : f32
    %206 = vector.broadcast %cst_87 : f32 to vector<8x128xf32>
    %207 = arith.maximumf %205, %206 : vector<8x128xf32>
    %208 = arith.truncf %207 : vector<8x128xf32> to vector<8x128xbf16>
    %c0_88 = arith.constant 0 : index
    %c0_89 = arith.constant 0 : index
    %209 = vector.load %arg8[%c0_88, %c0_89] : memref<128x128xbf16, #tpu.memory_space<vmem>>, vector<128x128xbf16>
    %cst_90 = arith.constant dense<0.000000e+00> : vector<8x128xf32>
    %210 = tpu.matmul %208, %209, %cst_90 {dimension_numbers = #tpu.dot_dimension_numbers<[1], [0], [0], [1], [0, 0, 1, 1], [], []>} : vector<8x128xbf16>, vector<128x128xbf16>, vector<8x128xf32> -> vector<8x128xf32>
    %cst_91 = arith.constant dense<0.000000e+00> : vector<8xf32>
    %211 = vector.multi_reduction <add>, %210, %cst_91 [1] : vector<8x128xf32> to vector<8xf32>
    %212 = vector.shape_cast %211 : vector<8xf32> to vector<8x1xf32>
    %cst_92 = arith.constant 3.125000e-02 : f32
    %213 = vector.broadcast %cst_92 : f32 to vector<8x1xf32>
    %214 = arith.mulf %212, %213 : vector<8x1xf32>
    %215 = vector.broadcast %214 : vector<8x1xf32> to vector<8x128xf32>
    %216 = arith.subf %210, %215 : vector<8x128xf32>
    %217 = arith.mulf %216, %216 : vector<8x128xf32>
    %cst_93 = arith.constant dense<0.000000e+00> : vector<8xf32>
    %218 = vector.multi_reduction <add>, %217, %cst_93 [1] : vector<8x128xf32> to vector<8xf32>
    %219 = vector.shape_cast %218 : vector<8xf32> to vector<8x1xf32>
    %220 = arith.mulf %214, %214 : vector<8x1xf32>
    %cst_94 = arith.constant 9.600000e+01 : f32
    %221 = vector.broadcast %cst_94 : f32 to vector<8x1xf32>
    %222 = arith.mulf %221, %220 : vector<8x1xf32>
    %223 = arith.subf %219, %222 : vector<8x1xf32>
    %cst_95 = arith.constant 3.125000e-02 : f32
    %224 = vector.broadcast %cst_95 : f32 to vector<8x1xf32>
    %225 = arith.mulf %223, %224 : vector<8x1xf32>
    %cst_96 = arith.constant 9.99999974E-6 : f32
    %226 = vector.broadcast %cst_96 : f32 to vector<8x1xf32>
    %227 = arith.addf %225, %226 : vector<8x1xf32>
    %228 = math.rsqrt %227 : vector<8x1xf32>
    %229 = vector.broadcast %228 : vector<8x1xf32> to vector<8x128xf32>
    %230 = arith.mulf %216, %229 : vector<8x128xf32>
    %c0_97 = arith.constant 0 : index
    %c0_98 = arith.constant 0 : index
    %231 = vector.load %arg13[%c0_97, %c0_98] : memref<1x128xf32, #tpu.memory_space<vmem>>, vector<1x128xf32>
    %232 = vector.broadcast %231 : vector<1x128xf32> to vector<8x128xf32>
    %233 = arith.mulf %230, %232 : vector<8x128xf32>
    %c0_99 = arith.constant 0 : index
    %c0_100 = arith.constant 0 : index
    %234 = vector.load %arg14[%c0_99, %c0_100] : memref<1x128xf32, #tpu.memory_space<vmem>>, vector<1x128xf32>
    %235 = vector.broadcast %234 : vector<1x128xf32> to vector<8x128xf32>
    %236 = arith.addf %233, %235 : vector<8x128xf32>
    %237 = arith.addf %236, %204 : vector<8x128xf32>
    %238 = arith.negf %237 : vector<8x128xf32>
    %239 = math.exp %238 : vector<8x128xf32>
    %cst_101 = arith.constant 1.000000e+00 : f32
    %240 = vector.broadcast %cst_101 : f32 to vector<8x128xf32>
    %241 = arith.addf %240, %239 : vector<8x128xf32>
    %242 = arith.divf %240, %241 : vector<8x128xf32>
    %cst_102 = arith.constant 1.000000e+00 : f32
    %243 = vector.broadcast %cst_102 : f32 to vector<8x128xf32>
    %244 = arith.subf %243, %242 : vector<8x128xf32>
    %245 = arith.mulf %244, %0 : vector<8x128xf32>
    %246 = arith.mulf %242, %207 : vector<8x128xf32>
    %247 = arith.addf %245, %246 : vector<8x128xf32>
    %c0_103 = arith.constant 0 : index
    %c0_104 = arith.constant 0 : index
    %248 = vector.load %arg15[%c0_103, %c0_104] : memref<8x128xf32, #tpu.memory_space<vmem>>, vector<8x128xf32>
    tpu.vector_store %arg15[%c0_103, %c0_104], %247 {strides = array<i32>} : memref<8x128xf32, #tpu.memory_space<vmem>>, vector<8x128xf32>,
    return
  }
  func.func @transform_0(%arg0: i32) -> (i32, i32, i32) {
    %c0_i32 = arith.constant 0 : i32
    %c0_i32_0 = arith.constant 0 : i32
    %c0_i32_1 = arith.constant 0 : i32
    return %c0_i32, %arg0, %c0_i32_0 : i32, i32, i32
  }
  func.func @transform_1(%arg0: i32) -> (i32, i32) {
    %c0_i32 = arith.constant 0 : i32
    %c0_i32_0 = arith.constant 0 : i32
    return %arg0, %c0_i32 : i32, i32
  }
  func.func @transform_2(%arg0: i32) -> (i32, i32) {
    %c0_i32 = arith.constant 0 : i32
    %c0_i32_0 = arith.constant 0 : i32
    %c0_i32_1 = arith.constant 0 : i32
    return %c0_i32, %c0_i32_0 : i32, i32
  }
  func.func @transform_3(%arg0: i32) -> (i32, i32) {
    %c0_i32 = arith.constant 0 : i32
    %c0_i32_0 = arith.constant 0 : i32
    %c0_i32_1 = arith.constant 0 : i32
    return %c0_i32, %c0_i32_0 : i32, i32
  }
  func.func @transform_4(%arg0: i32) -> (i32, i32) {
    %c0_i32 = arith.constant 0 : i32
    %c0_i32_0 = arith.constant 0 : i32
    %c0_i32_1 = arith.constant 0 : i32
    return %c0_i32, %c0_i32_0 : i32, i32
  }
  func.func @transform_5(%arg0: i32) -> (i32, i32) {
    %c0_i32 = arith.constant 0 : i32
    %c0_i32_0 = arith.constant 0 : i32
    %c0_i32_1 = arith.constant 0 : i32
    return %c0_i32, %c0_i32_0 : i32, i32
  }
  func.func @transform_6(%arg0: i32) -> (i32, i32) {
    %c0_i32 = arith.constant 0 : i32
    %c0_i32_0 = arith.constant 0 : i32
    %c0_i32_1 = arith.constant 0 : i32
    return %c0_i32, %c0_i32_0 : i32, i32
  }
  func.func @transform_7(%arg0: i32) -> (i32, i32) {
    %c0_i32 = arith.constant 0 : i32
    %c0_i32_0 = arith.constant 0 : i32
    %c0_i32_1 = arith.constant 0 : i32
    return %c0_i32, %c0_i32_0 : i32, i32
  }
  func.func @transform_8(%arg0: i32) -> (i32, i32) {
    %c0_i32 = arith.constant 0 : i32
    %c0_i32_0 = arith.constant 0 : i32
    %c0_i32_1 = arith.constant 0 : i32
    return %c0_i32, %c0_i32_0 : i32, i32
  }
  func.func @transform_9(%arg0: i32) -> (i32, i32) {
    %c0_i32 = arith.constant 0 : i32
    %c0_i32_0 = arith.constant 0 : i32
    %c0_i32_1 = arith.constant 0 : i32
    return %c0_i32, %c0_i32_0 : i32, i32
  }
  func.func @transform_10(%arg0: i32) -> (i32, i32) {
    %c0_i32 = arith.constant 0 : i32
    %c0_i32_0 = arith.constant 0 : i32
    %c0_i32_1 = arith.constant 0 : i32
    return %c0_i32, %c0_i32_0 : i32, i32
  }
  func.func @transform_11(%arg0: i32) -> (i32, i32) {
    %c0_i32 = arith.constant 0 : i32
    %c0_i32_0 = arith.constant 0 : i32
    %c0_i32_1 = arith.constant 0 : i32
    return %c0_i32, %c0_i32_0 : i32, i32
  }
  func.func @transform_12(%arg0: i32) -> (i32, i32) {
    %c0_i32 = arith.constant 0 : i32
    %c0_i32_0 = arith.constant 0 : i32
    %c0_i32_1 = arith.constant 0 : i32
    return %c0_i32, %c0_i32_0 : i32, i32
  }
  func.func @transform_13(%arg0: i32) -> (i32, i32) {
    %c0_i32 = arith.constant 0 : i32
    %c0_i32_0 = arith.constant 0 : i32
    %c0_i32_1 = arith.constant 0 : i32
    return %c0_i32, %c0_i32_0 : i32, i32
  }
  func.func @transform_14(%arg0: i32) -> (i32, i32) {
    %c0_i32 = arith.constant 0 : i32
    %c0_i32_0 = arith.constant 0 : i32
    return %arg0, %c0_i32 : i32, i32
  }
}

</mosaic_0001>

<llo_original>
// kernel: layer_forward.1
$region0: #{layer_forward.1}
  #allocation0 [shape = 'u32[]', space=smem, size = 0x4, offset = 0x4, fixed_abs, tag = 'smem constant byte address 0x4 - core index']
  #allocation1 [shape = 'u32[144,128]{1,0:T(1,128)}', space=vmem, size = 0x12000, scoped, tag = 'internal scratch']
  %s0 = inlined_call_operand.vmem [shape: f32[4,8,128], index: 0, kind: input, shape index: {}]
  %s1 = inlined_call_operand.vmem [shape: f32[8,128], index: 1, kind: input, shape index: {}]
  %s2 = inlined_call_operand.vmem [shape: f32[4,128], index: 2, kind: input, shape index: {}]
  %s3 = inlined_call_operand.vmem [shape: f32[4,128], index: 3, kind: input, shape index: {}]
  %s4 = inlined_call_operand.hbm [shape: f32[4,128], index: 4, kind: input, shape index: {}]
  %s5 = inlined_call_operand.hbm [shape: f32[4,128], index: 5, kind: input, shape index: {}]
  %s6 = inlined_call_operand.vmem [shape: bf16[128,256], index: 6, kind: input, shape index: {}]
  %s7 = inlined_call_operand.hbm [shape: bf16[128,128], index: 7, kind: input, shape index: {}]
  %s8 = inlined_call_operand.vmem [shape: f32[1,128], index: 8, kind: input, shape index: {}]
  %s9 = inlined_call_operand.vmem [shape: f32[1,128], index: 9, kind: input, shape index: {}]
  %s10 = inlined_call_operand.hbm [shape: f32[1,128], index: 10, kind: input, shape index: {}]
  %s11 = inlined_call_operand.hbm [shape: f32[1,128], index: 11, kind: input, shape index: {}]
  %s12 = inlined_call_operand.hbm [shape: f32[1,128], index: 12, kind: input, shape index: {}]
  %s13 = inlined_call_operand.hbm [shape: f32[1,128], index: 13, kind: input, shape index: {}]
  %s14 = inlined_call_operand.vmem [shape: f32[8,128], index: 14, kind: output, shape index: {}]
  %s15 = sld [smem:[#allocation0]]
  $region94: #{layer_forward.1} parent=0
    _
  %s17 = ssub.s32 1, %s15
  %s18 = scalar_select 0, %s17, %s15
  $region1: #{layer_forward.1} parent=0
    #allocation2 [shape = 'u8[2048]{0}', space=vmem, size = 0x800, scoped, tag = 'input window, operand 4, single buffered']
    #allocation3 [shape = 's32[1]{0}', space=sflag, size = 0x4, scoped, tag = 'scoped memory for layer_forward.1']
    #allocation4 [shape = 'u8[2048]{0}', space=vmem, size = 0x800, scoped, tag = 'input window, operand 5, single buffered']
    #allocation5 [shape = 's32[1]{0}', space=sflag, size = 0x4, scoped, tag = 'scoped memory for layer_forward.1']
    #allocation6 [shape = 'u8[32768]{0}', space=vmem, size = 0x8000, scoped, tag = 'input window, operand 7, single buffered']
    #allocation7 [shape = 'u8[512]{0}', space=vmem, size = 0x400, scoped, tag = 'input window, operand 10, single buffered']
    #allocation8 [shape = 's32[1]{0}', space=sflag, size = 0x4, scoped, tag = 'scoped memory for layer_forward.1']
    #allocation9 [shape = 'u8[512]{0}', space=vmem, size = 0x400, scoped, tag = 'input window, operand 11, single buffered']
    #allocation10 [shape = 'u8[512]{0}', space=vmem, size = 0x400, scoped, tag = 'input window, operand 12, single buffered']
    #allocation11 [shape = 's32[1]{0}', space=sflag, size = 0x4, scoped, tag = 'scoped memory for layer_forward.1']
    #allocation12 [shape = 'u8[512]{0}', space=vmem, size = 0x400, scoped, tag = 'input window, operand 13, single buffered']
    %19 = vsyncpa [#allocation3], 0
    %20 = vsyncpa [#allocation5], 0
    %21 = vsyncpa [#allocation8], 0
    %22 = vsyncpa [#allocation11], 0
    // Predicated region
    $region2: #{layer_forward.1} parent=1 // pred_check
      _
    $region3: #{layer_forward.1} parent=1 // pred_check_branch
      %24 = sbr.rel (0) target = $region5
    $region4: #{layer_forward.1} parent=1 // pred_region
      _
    $region5: #{layer_forward.1} parent=1 // pred_fallthru
      _
    // Predicated region
    $region6: #{layer_forward.1} parent=1 // pred_check
      _
    $region7: #{layer_forward.1} parent=1 // pred_check_branch
      %26 = sbr.rel (0) target = $region9
    $region8: #{layer_forward.1} parent=1 // pred_region
      _
    $region9: #{layer_forward.1} parent=1 // pred_fallthru
      _
    // Predicated region
    $region10: #{layer_forward.1} parent=1 // pred_check
      _
    $region11: #{layer_forward.1} parent=1 // pred_check_branch
      %28 = sbr.rel (0) target = $region13
    $region12: #{layer_forward.1} parent=1 // pred_region
      _
    $region13: #{layer_forward.1} parent=1 // pred_fallthru
      _
    // Predicated region
    $region14: #{layer_forward.1} parent=1 // pred_check
      _
    $region15: #{layer_forward.1} parent=1 // pred_check_branch
      %30 = sbr.rel (0) target = $region17
    $region16: #{layer_forward.1} parent=1 // pred_region
      _
    $region17: #{layer_forward.1} parent=1 // pred_fallthru
      _
    // Predicated region
    $region18: #{layer_forward.1} parent=1 // pred_check
      _
    $region19: #{layer_forward.1} parent=1 // pred_check_branch
      %32 = sbr.rel (0) target = $region21
    $region20: #{layer_forward.1} parent=1 // pred_region
      %s34 = ssub.s32 64, 64
      %35 = vsyncadd [#allocation3], %s34
      %s37 = sshll.u32 [#allocation2], 4
      %s38 = int_to_ptr.vmem [resolvable:$true] %s37
      %40 = dma.hbm_to_vmem [thread:$0]  %s4, 64, %s38, [#allocation3]
    $region21: #{layer_forward.1} parent=1 // pred_fallthru
      _
    // Predicated region
    $region22: #{layer_forward.1} parent=1 // pred_check
      _
    $region23: #{layer_forward.1} parent=1 // pred_check_branch
      %42 = sbr.rel (0) target = $region25
    $region24: #{layer_forward.1} parent=1 // pred_region
      %s44 = ssub.s32 64, 64
      %45 = vsyncadd [#allocation5], %s44
      %s47 = sshll.u32 [#allocation4], 4
      %s48 = int_to_ptr.vmem [resolvable:$true] %s47
      %50 = dma.hbm_to_vmem [thread:$0]  %s5, 64, %s48, [#allocation5]
    $region25: #{layer_forward.1} parent=1 // pred_fallthru
      _
    // Predicated region
    $region26: #{layer_forward.1} parent=1 // pred_check
      _
    $region27: #{layer_forward.1} parent=1 // pred_check_branch
      %52 = sbr.rel (0) target = $region29
    $region28: #{layer_forward.1} parent=1 // pred_region
      _
    $region29: #{layer_forward.1} parent=1 // pred_fallthru
      _
    // Predicated region
    $region30: #{layer_forward.1} parent=1 // pred_check
      _
    $region31: #{layer_forward.1} parent=1 // pred_check_branch
      %54 = sbr.rel (0) target = $region33
    $region32: #{layer_forward.1} parent=1 // pred_region
      %s56 = ssub.s32 1024, 1024
      %57 = vsyncadd [#allocation5], %s56
      %s58 = sshll.u32 [#allocation6], 4
      %s59 = int_to_ptr.vmem [resolvable:$true] %s58
      %64 = dma.hbm_to_vmem [thread:$0]  %s7, 1024, %s59, [#allocation5], 64, 64, 4
    $region33: #{layer_forward.1} parent=1 // pred_fallthru
      _
    // Predicated region
    $region34: #{layer_forward.1} parent=1 // pred_check
      _
    $region35: #{layer_forward.1} parent=1 // pred_check_branch
      %66 = sbr.rel (0) target = $region37
    $region36: #{layer_forward.1} parent=1 // pred_region
      _
    $region37: #{layer_forward.1} parent=1 // pred_fallthru
      _
    // Predicated region
    $region38: #{layer_forward.1} parent=1 // pred_check
      _
    $region39: #{layer_forward.1} parent=1 // pred_check_branch
      %68 = sbr.rel (0) target = $region41
    $region40: #{layer_forward.1} parent=1 // pred_region
      _
    $region41: #{layer_forward.1} parent=1 // pred_fallthru
      _
    // Predicated region
    $region42: #{layer_forward.1} parent=1 // pred_check
      _
    $region43: #{layer_forward.1} parent=1 // pred_check_branch
      %70 = sbr.rel (0) target = $region45
    $region44: #{layer_forward.1} parent=1 // pred_region
      %s72 = ssub.s32 16, 16
      %73 = vsyncadd [#allocation8], %s72
      %s75 = sshll.u32 [#allocation7], 4
      %s76 = int_to_ptr.vmem [resolvable:$true] %s75
      %78 = dma.hbm_to_vmem [thread:$0]  %s10, 16, %s76, [#allocation8]
    $region45: #{layer_forward.1} parent=1 // pred_fallthru
      _
    // Predicated region
    $region46: #{layer_forward.1} parent=1 // pred_check
      _
    $region47: #{layer_forward.1} parent=1 // pred_check_branch
      %80 = sbr.rel (0) target = $region49
    $region48: #{layer_forward.1} parent=1 // pred_region
      %s82 = ssub.s32 16, 16
      %83 = vsyncadd [#allocation8], %s82
      %s85 = sshll.u32 [#allocation9], 4
      %s86 = int_to_ptr.vmem [resolvable:$true] %s85
      %88 = dma.hbm_to_vmem [thread:$0]  %s11, 16, %s86, [#allocation8]
    $region49: #{layer_forward.1} parent=1 // pred_fallthru
      _
    // Predicated region
    $region50: #{layer_forward.1} parent=1 // pred_check
      _
    $region51: #{layer_forward.1} parent=1 // pred_check_branch
      %90 = sbr.rel (0) target = $region53
    $region52: #{layer_forward.1} parent=1 // pred_region
      %s92 = ssub.s32 16, 16
      %93 = vsyncadd [#allocation11], %s92
      %s95 = sshll.u32 [#allocation10], 4
      %s96 = int_to_ptr.vmem [resolvable:$true] %s95
      %98 = dma.hbm_to_vmem [thread:$0]  %s12, 16, %s96, [#allocation11]
    $region53: #{layer_forward.1} parent=1 // pred_fallthru
      _
    // Predicated region
    $region54: #{layer_forward.1} parent=1 // pred_check
      _
    $region55: #{layer_forward.1} parent=1 // pred_check_branch
      %100 = sbr.rel (0) target = $region57
    $region56: #{layer_forward.1} parent=1 // pred_region
      %s102 = ssub.s32 16, 16
      %103 = vsyncadd [#allocation11], %s102
      %s105 = sshll.u32 [#allocation12], 4
      %s106 = int_to_ptr.vmem [resolvable:$true] %s105
      %108 = dma.hbm_to_vmem [thread:$0]  %s13, 16, %s106, [#allocation11]
    $region57: #{layer_forward.1} parent=1 // pred_fallthru
      _
    // Predicated region
    $region58: #{layer_forward.1} parent=1 // pred_check
      _
    $region59: #{layer_forward.1} parent=1 // pred_check_branch
      %110 = sbr.rel (0) target = $region61
    $region60: #{layer_forward.1} parent=1 // pred_region
      %111 = dma.done [#allocation3], 64
    $region61: #{layer_forward.1} parent=1 // pred_fallthru
      _
    // Predicated region
    $region62: #{layer_forward.1} parent=1 // pred_check
      _
    $region63: #{layer_forward.1} parent=1 // pred_check_branch
      %113 = sbr.rel (0) target = $region65
    $region64: #{layer_forward.1} parent=1 // pred_region
      %114 = dma.done [#allocation5], 64
    $region65: #{layer_forward.1} parent=1 // pred_fallthru
      _
    // Predicated region
    $region66: #{layer_forward.1} parent=1 // pred_check
      _
    $region67: #{layer_forward.1} parent=1 // pred_check_branch
      %116 = sbr.rel (0) target = $region69
    $region68: #{layer_forward.1} parent=1 // pred_region
      %117 = dma.done [#allocation5], 1024
    $region69: #{layer_forward.1} parent=1 // pred_fallthru
      _
    // Predicated region
    $region70: #{layer_forward.1} parent=1 // pred_check
      _
    $region71: #{layer_forward.1} parent=1 // pred_check_branch
      %119 = sbr.rel (0) target = $region73
    $region72: #{layer_forward.1} parent=1 // pred_region
      %120 = dma.done [#allocation8], 16
    $region73: #{layer_forward.1} parent=1 // pred_fallthru
      _
    // Predicated region
    $region74: #{layer_forward.1} parent=1 // pred_check
      _
    $region75: #{layer_forward.1} parent=1 // pred_check_branch
      %122 = sbr.rel (0) target = $region77
    $region76: #{layer_forward.1} parent=1 // pred_region
      %123 = dma.done [#allocation8], 16
    $region77: #{layer_forward.1} parent=1 // pred_fallthru
      _
    // Predicated region
    $region78: #{layer_forward.1} parent=1 // pred_check
      _
    $region79: #{layer_forward.1} parent=1 // pred_check_branch
      %125 = sbr.rel (0) target = $region81
    $region80: #{layer_forward.1} parent=1 // pred_region
      %126 = dma.done [#allocation11], 16
    $region81: #{layer_forward.1} parent=1 // pred_fallthru
      _
    // Predicated region
    $region82: #{layer_forward.1} parent=1 // pred_check
      _
    $region83: #{layer_forward.1} parent=1 // pred_check_branch
      %128 = sbr.rel (0) target = $region85
    $region84: #{layer_forward.1} parent=1 // pred_region
      %129 = dma.done [#allocation11], 16
    $region85: #{layer_forward.1} parent=1 // pred_fallthru
      _
    %v131 = vld [vmem:[%s1] sm:$0xff]
    %v132 = vld [vmem:[%s0] sm:$0xff]
    %133 = vadd.xlane.f32.xlu0 %v132
    %v134 = vpop.xlane.xlu0 %133
    %v135 = vmul.f32 %v134, 0.03125
    %v136 = vsub.f32 %v132, %v135
    %v137 = vmul.f32 %v136, %v136
    %138 = vadd.xlane.f32.xlu0 %v137
    %v139 = vpop.xlane.xlu0 %138
    %v140 = vmul.f32 %v135, %v135
    %v141 = vmul.f32 %v140, 96.0
    %v142 = vsub.f32 %v139, %v141
    %v143 = vmul.f32 %v142, 0.03125
    %v144 = vadd.f32 %v143, 1e-05
    %v145 = vrsqrt.pop %v144
    %v146 = vmul.f32 %v136, %v145
    %v147 = vld [vmem:[%s2] sm:$0x1]
    %v148 = vlaneseq
    %v149 = vshrl.u32 %v148, 7
    %v150 = vsub.s32 0, %v149
    %v151 = vrot.slane %v147, %v150
    %v152 = vmul.f32 %v146, %v151
    %v153 = vld [vmem:[%s3] sm:$0x1]
    %v154 = vlaneseq
    %v155 = vshrl.u32 %v154, 7
    %v156 = vsub.s32 0, %v155
    %v157 = vrot.slane %v153, %v156
    %v158 = vadd.f32 %v152, %v157
    %v159 = vld [vmem:[#allocation2] sm:$0x1]
    %v160 = vlaneseq
    %v161 = vshrl.u32 %v160, 7
    %v162 = vsub.s32 0, %v161
    %v163 = vrot.slane %v159, %v162
    %v164 = vmul.f32 %v131, %v163
    %v165 = vld [vmem:[#allocation4] sm:$0x1]
    %v166 = vlaneseq
    %v167 = vshrl.u32 %v166, 7
    %v168 = vsub.s32 0, %v167
    %v169 = vrot.slane %v165, %v168
    %v170 = vadd.f32 %v164, %v169
    %v171 = vxor.u32 %v170, 2147483648
    %v172 = vmul.f32 %v171, 1.442695
    %v173 = vpow.pop %v172
    %v174 = vadd.f32 %v173, 1.0
    %v175 = vrcp.pop %v174
    %v176 = vmul.f32 1.0, %v175
    %v177 = vmul.f32 %v176, %v158
    %s178 = scalar_lea.vmem %s0, 8
    %v179 = vld [vmem:[%s178] sm:$0xff]
    %180 = vadd.xlane.f32.xlu0 %v179
    %v181 = vpop.xlane.xlu0 %180
    %v182 = vmul.f32 %v181, 0.03125
    %v183 = vsub.f32 %v179, %v182
    %v184 = vmul.f32 %v183, %v183
    %185 = vadd.xlane.f32.xlu0 %v184
    %v186 = vpop.xlane.xlu0 %185
    %v187 = vmul.f32 %v182, %v182
    %v188 = vmul.f32 %v187, 96.0
    %v189 = vsub.f32 %v186, %v188
    %v190 = vmul.f32 %v189, 0.03125
    %v191 = vadd.f32 %v190, 1e-05
    %v192 = vrsqrt.pop %v191
    %v193 = vmul.f32 %v183, %v192
    %v194 = vld [vmem:[%s2 + $0x1] sm:$0x1]
    %v195 = vlaneseq
    %v196 = vshrl.u32 %v195, 7
    %v197 = vsub.s32 0, %v196
    %v198 = vrot.slane %v194, %v197
    %v199 = vmul.f32 %v193, %v198
    %v200 = vld [vmem:[%s3 + $0x1] sm:$0x1]
    %v201 = vlaneseq
    %v202 = vshrl.u32 %v201, 7
    %v203 = vsub.s32 0, %v202
    %v204 = vrot.slane %v200, %v203
    %v205 = vadd.f32 %v199, %v204
    %v206 = vld [vmem:[#allocation2 + $0x1] sm:$0x1]
    %v207 = vlaneseq
    %v208 = vshrl.u32 %v207, 7
    %v209 = vsub.s32 0, %v208
    %v210 = vrot.slane %v206, %v209
    %v211 = vmul.f32 %v131, %v210
    %v212 = vld [vmem:[#allocation4 + $0x1] sm:$0x1]
    %v213 = vlaneseq
    %v214 = vshrl.u32 %v213, 7
    %v215 = vsub.s32 0, %v214
    %v216 = vrot.slane %v212, %v215
    %v217 = vadd.f32 %v211, %v216
    %v218 = vxor.u32 %v217, 2147483648
    %v219 = vmul.f32 %v218, 1.442695
    %v220 = vpow.pop %v219
    %v221 = vadd.f32 %v220, 1.0
    %v222 = vrcp.pop %v221
    %v223 = vmul.f32 1.0, %v222
    %v224 = vmul.f32 %v223, %v205
    %v225 = vadd.f32 %v177, %v224
    %s226 = scalar_lea.vmem %s0, 16
    %v227 = vld [vmem:[%s226] sm:$0xff]
    %228 = vadd.xlane.f32.xlu0 %v227
    %v229 = vpop.xlane.xlu0 %228
    %v230 = vmul.f32 %v229, 0.03125
    %v231 = vsub.f32 %v227, %v230
    %v232 = vmul.f32 %v231, %v231
    %233 = vadd.xlane.f32.xlu0 %v232
    %v234 = vpop.xlane.xlu0 %233
    %v235 = vmul.f32 %v230, %v230
    %v236 = vmul.f32 %v235, 96.0
    %v237 = vsub.f32 %v234, %v236
    %v238 = vmul.f32 %v237, 0.03125
    %v239 = vadd.f32 %v238, 1e-05
    %v240 = vrsqrt.pop %v239
    %v241 = vmul.f32 %v231, %v240
    %v242 = vld [vmem:[%s2 + $0x2] sm:$0x1]
    %v243 = vlaneseq
    %v244 = vshrl.u32 %v243, 7
    %v245 = vsub.s32 0, %v244
    %v246 = vrot.slane %v242, %v245
    %v247 = vmul.f32 %v241, %v246
    %v248 = vld [vmem:[%s3 + $0x2] sm:$0x1]
    %v249 = vlaneseq
    %v250 = vshrl.u32 %v249, 7
    %v251 = vsub.s32 0, %v250
    %v252 = vrot.slane %v248, %v251
    %v253 = vadd.f32 %v247, %v252
    %v254 = vld [vmem:[#allocation2 + $0x2] sm:$0x1]
    %v255 = vlaneseq
    %v256 = vshrl.u32 %v255, 7
    %v257 = vsub.s32 0, %v256
    %v258 = vrot.slane %v254, %v257
    %v259 = vmul.f32 %v131, %v258
    %v260 = vld [vmem:[#allocation4 + $0x2] sm:$0x1]
    %v261 = vlaneseq
    %v262 = vshrl.u32 %v261, 7
    %v263 = vsub.s32 0, %v262
    %v264 = vrot.slane %v260, %v263
    %v265 = vadd.f32 %v259, %v264
    %v266 = vxor.u32 %v265, 2147483648
    %v267 = vmul.f32 %v266, 1.442695
    %v268 = vpow.pop %v267
    %v269 = vadd.f32 %v268, 1.0
    %v270 = vrcp.pop %v269
    %v271 = vmul.f32 1.0, %v270
    %v272 = vmul.f32 %v271, %v253
    %v273 = vadd.f32 %v225, %v272
    %s274 = scalar_lea.vmem %s0, 24
    %v275 = vld [vmem:[%s274] sm:$0xff]
    %276 = vadd.xlane.f32.xlu0 %v275
    %v277 = vpop.xlane.xlu0 %276
    %v278 = vmul.f32 %v277, 0.03125
    %v279 = vsub.f32 %v275, %v278
    %v280 = vmul.f32 %v279, %v279
    %281 = vadd.xlane.f32.xlu0 %v280
    %v282 = vpop.xlane.xlu0 %281
    %v283 = vmul.f32 %v278, %v278
    %v284 = vmul.f32 %v283, 96.0
    %v285 = vsub.f32 %v282, %v284
    %v286 = vmul.f32 %v285, 0.03125
    %v287 = vadd.f32 %v286, 1e-05
    %v288 = vrsqrt.pop %v287
    %v289 = vmul.f32 %v279, %v288
    %v290 = vld [vmem:[%s2 + $0x3] sm:$0x1]
    %v291 = vlaneseq
    %v292 = vshrl.u32 %v291, 7
    %v293 = vsub.s32 0, %v292
    %v294 = vrot.slane %v290, %v293
    %v295 = vmul.f32 %v289, %v294
    %v296 = vld [vmem:[%s3 + $0x3] sm:$0x1]
    %v297 = vlaneseq
    %v298 = vshrl.u32 %v297, 7
    %v299 = vsub.s32 0, %v298
    %v300 = vrot.slane %v296, %v299
    %v301 = vadd.f32 %v295, %v300
    %v302 = vld [vmem:[#allocation2 + $0x3] sm:$0x1]
    %v303 = vlaneseq
    %v304 = vshrl.u32 %v303, 7
    %v305 = vsub.s32 0, %v304
    %v306 = vrot.slane %v302, %v305
    %v307 = vmul.f32 %v131, %v306
    %v308 = vld [vmem:[#allocation4 + $0x3] sm:$0x1]
    %v309 = vlaneseq
    %v310 = vshrl.u32 %v309, 7
    %v311 = vsub.s32 0, %v310
    %v312 = vrot.slane %v308, %v311
    %v313 = vadd.f32 %v307, %v312
    %v314 = vxor.u32 %v313, 2147483648
    %v315 = vmul.f32 %v314, 1.442695
    %v316 = vpow.pop %v315
    %v317 = vadd.f32 %v316, 1.0
    %v318 = vrcp.pop %v317
    %v319 = vmul.f32 1.0, %v318
    %v320 = vmul.f32 %v319, %v301
    %v321 = vadd.f32 %v273, %v320
    %v322 = vmax.f32 %v321, 0.0
    %v323 = vpack.c.bf16 %v131, %v131
    %v324 = vld [vmem:[%s6] sm:$0xff]
    %v325 = vld [vmem:[%s6 + $0x8] sm:$0xff]
    %v326 = vld [vmem:[%s6 + $0x10] sm:$0xff]
    %v327 = vld [vmem:[%s6 + $0x18] sm:$0xff]
    %v328 = vld [vmem:[%s6 + $0x20] sm:$0xff]
    %v329 = vld [vmem:[%s6 + $0x28] sm:$0xff]
    %v330 = vld [vmem:[%s6 + $0x30] sm:$0xff]
    %v331 = vld [vmem:[%s6 + $0x38] sm:$0xff]
    %v332 = vld [vmem:[%s6 + $0x40] sm:$0xff]
    %v333 = vld [vmem:[%s6 + $0x48] sm:$0xff]
    %v334 = vld [vmem:[%s6 + $0x50] sm:$0xff]
    %v335 = vld [vmem:[%s6 + $0x58] sm:$0xff]
    %v336 = vld [vmem:[%s6 + $0x60] sm:$0xff]
    %v337 = vld [vmem:[%s6 + $0x68] sm:$0xff]
    %v338 = vld [vmem:[%s6 + $0x70] sm:$0xff]
    %v339 = vld [vmem:[%s6 + $0x78] sm:$0xff]
    %v356 = vunpack.c.l.b16 %v324
    %v357 = vunpack.c.h.b16 %v324
    %v358 = vunpack.c.l.b16 %v325
    %v359 = vunpack.c.h.b16 %v325
    %v360 = vunpack.c.l.b16 %v326
    %v361 = vunpack.c.h.b16 %v326
    %v362 = vunpack.c.l.b16 %v327
    %v363 = vunpack.c.h.b16 %v327
    %v364 = vunpack.c.l.b16 %v328
    %v365 = vunpack.c.h.b16 %v328
    %v366 = vunpack.c.l.b16 %v329
    %v367 = vunpack.c.h.b16 %v329
    %v368 = vunpack.c.l.b16 %v330
    %v369 = vunpack.c.h.b16 %v330
    %v370 = vunpack.c.l.b16 %v331
    %v371 = vunpack.c.h.b16 %v331
    %v372 = vunpack.c.l.b16 %v332
    %v373 = vunpack.c.h.b16 %v332
    %v374 = vunpack.c.l.b16 %v333
    %v375 = vunpack.c.h.b16 %v333
    %v376 = vunpack.c.l.b16 %v334
    %v377 = vunpack.c.h.b16 %v334
    %v378 = vunpack.c.l.b16 %v335
    %v379 = vunpack.c.h.b16 %v335
    %v380 = vunpack.c.l.b16 %v336
    %v381 = vunpack.c.h.b16 %v336
    %v382 = vunpack.c.l.b16 %v337
    %v383 = vunpack.c.h.b16 %v337
    %v384 = vunpack.c.l.b16 %v338
    %v385 = vunpack.c.h.b16 %v338
    %v386 = vunpack.c.l.b16 %v339
    %v387 = vunpack.c.h.b16 %v339
    %v388 = vpack.c.b16 %v358, %v356
    %v389 = vpack.c.b16 %v359, %v357
    %v390 = vpack.c.b16 %v362, %v360
    %v391 = vpack.c.b16 %v363, %v361
    %v392 = vpack.c.b16 %v366, %v364
    %v393 = vpack.c.b16 %v367, %v365
    %v394 = vpack.c.b16 %v370, %v368
    %v395 = vpack.c.b16 %v371, %v369
    %v396 = vpack.c.b16 %v374, %v372
    %v397 = vpack.c.b16 %v375, %v373
    %v398 = vpack.c.b16 %v378, %v376
    %v399 = vpack.c.b16 %v379, %v377
    %v400 = vpack.c.b16 %v382, %v380
    %v401 = vpack.c.b16 %v383, %v381
    %v402 = vpack.c.b16 %v386, %v384
    %v403 = vpack.c.b16 %v387, %v385
    %420 = vmatprep.subr.bf16.mxu0 %v389
    %421 = vmatpush1.bf16.msra.mxu0 %v388
    %422 = vmatprep.subr.bf16.mxu0 %v391
    %423 = vmatpush1.bf16.msra.mxu0 %v390
    %424 = vmatprep.subr.bf16.mxu0 %v393
    %425 = vmatpush1.bf16.msra.mxu0 %v392
    %426 = vmatprep.subr.bf16.mxu0 %v395
    %427 = vmatpush1.bf16.msra.mxu0 %v394
    %428 = vmatprep.subr.bf16.mxu0 %v397
    %429 = vmatpush1.bf16.msra.mxu0 %v396
    %430 = vmatprep.subr.bf16.mxu0 %v399
    %431 = vmatpush1.bf16.msra.mxu0 %v398
    %432 = vmatprep.subr.bf16.mxu0 %v401
    %433 = vmatpush1.bf16.msra.mxu0 %v400
    %434 = vmatprep.subr.bf16.mxu0 %v403
    %435 = vmatpush1.bf16.msra.mxu0 %v402
    %436 = vmatprep.subr.bf16.mxu0 0
    %437 = vmatpush1.bf16.msra.mxu0 0
    %438 = vmatprep.subr.bf16.mxu0 0
    %439 = vmatpush1.bf16.msra.mxu0 0
    %440 = vmatprep.subr.bf16.mxu0 0
    %441 = vmatpush1.bf16.msra.mxu0 0
    %442 = vmatprep.subr.bf16.mxu0 0
    %443 = vmatpush1.bf16.msra.mxu0 0
    %444 = vmatprep.subr.bf16.mxu0 0
    %445 = vmatpush1.bf16.msra.mxu0 0
    %446 = vmatprep.subr.bf16.mxu0 0
    %447 = vmatpush1.bf16.msra.mxu0 0
    %448 = vmatprep.subr.bf16.mxu0 0
    %449 = vmatpush1.bf16.msra.mxu0 0
    %450 = vmatprep.subr.bf16.mxu0 0
    %451 = vmatpush1.bf16.msra.mxu0 0
    %452 = vmatprep.mubr.bf16.mxu0 0
    %453 = vmatmul.mubr.bf16.gmra.mrb[0].mxu0 %v323
    %v454 = vpop.f32.mrb[0].mxu0
    %v455 = vadd.f32 0.0, %v454
    %v456 = vpop.f32.mrb[0].mxu0
    %v457 = vadd.f32 0.0, %v456
    %v458 = vpop.f32.mrb[0].mxu0
    %v459 = vpop.f32.mrb[0].mxu0
    %460 = vdwg.mxu0
    %v461 = vadd.f32 %v455, %v457
    %462 = vadd.xlane.f32.xlu0 %v461
    %v463 = vpop.xlane.xlu0 %462
    %v464 = vmul.f32 %v463, 0.015625
    %v465 = vsub.f32 %v455, %v464
    %v466 = vsub.f32 %v457, %v464
    %v467 = vmul.f32 %v465, %v465
    %v468 = vmul.f32 %v466, %v466
    %v469 = vadd.f32 %v467, %v468
    %470 = vadd.xlane.f32.xlu0 %v469
    %v471 = vpop.xlane.xlu0 %470
    %v472 = vmul.f32 %v464, %v464
    %v473 = vmul.f32 %v472, 192.0
    %v474 = vsub.f32 %v471, %v473
    %v475 = vmul.f32 %v474, 0.015625
    %v476 = vadd.f32 %v475, 1e-05
    %v477 = vrsqrt.pop %v476
    %v478 = vmul.f32 %v465, %v477
    %v479 = vld [vmem:[%s8] sm:$0x1]
    %v481 = vlaneseq
    %v482 = vshrl.u32 %v481, 7
    %v483 = vsub.s32 0, %v482
    %v484 = vrot.slane %v479, %v483
    %v486 = vmul.f32 %v478, %v484
    %v487 = vld [vmem:[%s9] sm:$0x1]
    %v489 = vlaneseq
    %v490 = vshrl.u32 %v489, 7
    %v491 = vsub.s32 0, %v490
    %v492 = vrot.slane %v487, %v491
    %v494 = vadd.f32 %v486, %v492
    %v495 = vmul.f32 %v466, %v477
    %v496 = vld [vmem:[#allocation7] sm:$0x1]
    %v498 = vlaneseq
    %v499 = vshrl.u32 %v498, 7
    %v500 = vsub.s32 0, %v499
    %v501 = vrot.slane %v496, %v500
    %v503 = vmul.f32 %v495, %v501
    %v504 = vld [vmem:[#allocation9] sm:$0x1]
    %v506 = vlaneseq
    %v507 = vshrl.u32 %v506, 7
    %v508 = vsub.s32 0, %v507
    %v509 = vrot.slane %v504, %v508
    %v511 = vadd.f32 %v503, %v509
    %v512 = vadd.f32 %v322, %v494
    %v513 = vmax.f32 %v512, 0.0
    %v514 = vpack.c.bf16 %v513, %v513
    %v515 = vld [vmem:[#allocation6] sm:$0xf]
    %v516 = vld [vmem:[#allocation6 + $0x4] sm:$0xf]
    %v517 = vld [vmem:[#allocation6 + $0x8] sm:$0xf]
    %v518 = vld [vmem:[#allocation6 + $0xc] sm:$0xf]
    %v519 = vld [vmem:[#allocation6 + $0x10] sm:$0xf]
    %v520 = vld [vmem:[#allocation6 + $0x14] sm:$0xf]
    %v521 = vld [vmem:[#allocation6 + $0x18] sm:$0xf]
    %v522 = vld [vmem:[#allocation6 + $0x1c] sm:$0xf]
    %v523 = vld [vmem:[#allocation6 + $0x20] sm:$0xf]
    %v524 = vld [vmem:[#allocation6 + $0x24] sm:$0xf]
    %v525 = vld [vmem:[#allocation6 + $0x28] sm:$0xf]
    %v526 = vld [vmem:[#allocation6 + $0x2c] sm:$0xf]
    %v527 = vld [vmem:[#allocation6 + $0x30] sm:$0xf]
    %v528 = vld [vmem:[#allocation6 + $0x34] sm:$0xf]
    %v529 = vld [vmem:[#allocation6 + $0x38] sm:$0xf]
    %v530 = vld [vmem:[#allocation6 + $0x3c] sm:$0xf]
    %v547 = vunpack.c.l.b16 %v515
    %v548 = vunpack.c.l.b16 %v516
    %v549 = vunpack.c.l.b16 %v517
    %v550 = vunpack.c.l.b16 %v518
    %v551 = vunpack.c.l.b16 %v519
    %v552 = vunpack.c.l.b16 %v520
    %v553 = vunpack.c.l.b16 %v521
    %v554 = vunpack.c.l.b16 %v522
    %v555 = vunpack.c.l.b16 %v523
    %v556 = vunpack.c.l.b16 %v524
    %v557 = vunpack.c.l.b16 %v525
    %v558 = vunpack.c.l.b16 %v526
    %v559 = vunpack.c.l.b16 %v527
    %v560 = vunpack.c.l.b16 %v528
    %v561 = vunpack.c.l.b16 %v529
    %v562 = vunpack.c.l.b16 %v530
    %v563 = vpack.c.b16 %v548, %v547
    %v564 = vpack.c.b16 %v550, %v549
    %v565 = vpack.c.b16 %v552, %v551
    %v566 = vpack.c.b16 %v554, %v553
    %v567 = vpack.c.b16 %v556, %v555
    %v568 = vpack.c.b16 %v558, %v557
    %v569 = vpack.c.b16 %v560, %v559
    %v570 = vpack.c.b16 %v562, %v561
    %579 = vmatprep.subr.bf16.mxu0 0
    %580 = vmatpush1.bf16.msra.mxu0 %v563
    %581 = vmatprep.subr.bf16.mxu0 0
    %582 = vmatpush1.bf16.msra.mxu0 %v564
    %583 = vmatprep.subr.bf16.mxu0 0
    %584 = vmatpush1.bf16.msra.mxu0 %v565
    %585 = vmatprep.subr.bf16.mxu0 0
    %586 = vmatpush1.bf16.msra.mxu0 %v566
    %587 = vmatprep.subr.bf16.mxu0 0
    %588 = vmatpush1.bf16.msra.mxu0 %v567
    %589 = vmatprep.subr.bf16.mxu0 0
    %590 = vmatpush1.bf16.msra.mxu0 %v568
    %591 = vmatprep.subr.bf16.mxu0 0
    %592 = vmatpush1.bf16.msra.mxu0 %v569
    %593 = vmatprep.subr.bf16.mxu0 0
    %594 = vmatpush1.bf16.msra.mxu0 %v570
    %595 = vmatprep.subr.bf16.mxu0 0
    %596 = vmatpush1.bf16.msra.mxu0 0
    %597 = vmatprep.subr.bf16.mxu0 0
    %598 = vmatpush1.bf16.msra.mxu0 0
    %599 = vmatprep.subr.bf16.mxu0 0
    %600 = vmatpush1.bf16.msra.mxu0 0
    %601 = vmatprep.subr.bf16.mxu0 0
    %602 = vmatpush1.bf16.msra.mxu0 0
    %603 = vmatprep.subr.bf16.mxu0 0
    %604 = vmatpush1.bf16.msra.mxu0 0
    %605 = vmatprep.subr.bf16.mxu0 0
    %606 = vmatpush1.bf16.msra.mxu0 0
    %607 = vmatprep.subr.bf16.mxu0 0
    %608 = vmatpush1.bf16.msra.mxu0 0
    %609 = vmatprep.subr.bf16.mxu0 0
    %610 = vmatpush1.bf16.msra.mxu0 0
    %611 = vmatprep.mubr.bf16.mxu0 0
    %612 = vmatmul.mubr.bf16.gmra.mrb[0].mxu0 %v514
    %v613 = vpop.f32.mrb[0].mxu0
    %v614 = vadd.f32 0.0, %v613
    %v615 = vpop.f32.mrb[0].mxu0
    %v616 = vpop.f32.mrb[0].mxu0
    %v617 = vpop.f32.mrb[0].mxu0
    %618 = vdwg.mxu0
    %619 = vadd.xlane.f32.xlu0 %v614
    %v620 = vpop.xlane.xlu0 %619
    %v621 = vmul.f32 %v620, 0.03125
    %v622 = vsub.f32 %v614, %v621
    %v623 = vmul.f32 %v622, %v622
    %624 = vadd.xlane.f32.xlu0 %v623
    %v625 = vpop.xlane.xlu0 %624
    %v626 = vmul.f32 %v621, %v621
    %v627 = vmul.f32 %v626, 96.0
    %v628 = vsub.f32 %v625, %v627
    %v629 = vmul.f32 %v628, 0.03125
    %v630 = vadd.f32 %v629, 1e-05
    %v631 = vrsqrt.pop %v630
    %v632 = vmul.f32 %v622, %v631
    %v633 = vld [vmem:[#allocation10] sm:$0x1]
    %v635 = vlaneseq
    %v636 = vshrl.u32 %v635, 7
    %v637 = vsub.s32 0, %v636
    %v638 = vrot.slane %v633, %v637
    %v640 = vmul.f32 %v632, %v638
    %v641 = vld [vmem:[#allocation12] sm:$0x1]
    %v643 = vlaneseq
    %v644 = vshrl.u32 %v643, 7
    %v645 = vsub.s32 0, %v644
    %v646 = vrot.slane %v641, %v645
    %v648 = vadd.f32 %v640, %v646
    %v649 = vadd.f32 %v648, %v511
    %v650 = vxor.u32 %v649, 2147483648
    %v651 = vmul.f32 %v650, 1.442695
    %v652 = vpow.pop %v651
    %v653 = vadd.f32 %v652, 1.0
    %v654 = vrcp.pop %v653
    %v655 = vmul.f32 1.0, %v654
    %v656 = vsub.f32 1.0, %v655
    %v657 = vmul.f32 %v656, %v131
    %v658 = vmul.f32 %v655, %v513
    %v659 = vadd.f32 %v657, %v658
    %660 = vst [vmem:[%s14] sm:$0xff] %v659
    // Predicated region
    $region86: #{layer_forward.1} parent=1 // pred_check
      _
    $region87: #{layer_forward.1} parent=1 // pred_check_branch
      %662 = sbr.rel (0) target = $region89
    $region88: #{layer_forward.1} parent=1 // pred_region
      _
    $region89: #{layer_forward.1} parent=1 // pred_fallthru
      _
    // Predicated region
    $region90: #{layer_forward.1} parent=1 // pred_check
      _
    $region91: #{layer_forward.1} parent=1 // pred_check_branch
      %664 = sbr.rel (0) target = $region93
    $region92: #{layer_forward.1} parent=1 // pred_region
      _
    $region93: #{layer_forward.1} parent=1 // pred_fallthru
      _
    %665 = vsyncpa [#allocation3], 1
    %666 = vsyncpa [#allocation5], 1
    %667 = vsyncpa [#allocation8], 1
    %668 = vsyncpa [#allocation11], 1

</llo_original>
